<compile_context>
chip_gen: v7x
topology: tpu7x:2x2x1
jax: 0.10.0
libtpu: 0.0.40
codegen_flags: <defaults>
</compile_context>

<pallas_src>
import jax
import jax.numpy as jnp
from jax.experimental import pallas as pl
from jax.experimental.pallas import tpu as pltpu


def _round_up(x, m):
    return (x + m - 1) // m * m


def predictor_kernel(x_ref, w1_ref, b1_ref, w2_ref, b2_ref, w3_ref, b3_ref, o_ref):
    """One (tile_b, input_dim) batch tile through the fused 3-layer MLP + softmax.

    Weights/biases are pipeline-invariant (constant index_map) and stay
    resident in VMEM across grid steps.  All matmuls accumulate in f32 on the
    MXU; LeakyReLU / softmax math stays f32.
    """
    x = x_ref[...]

    # FC1 + LeakyReLU(0.2)
    h1 = jnp.dot(x, w1_ref[...], preferred_element_type=jnp.float32) + b1_ref[...]
    h1 = jnp.where(h1 >= 0, h1, 0.2 * h1)

    # FC2 + LeakyReLU(0.2)
    h2 = jnp.dot(h1, w2_ref[...], preferred_element_type=jnp.float32) + b2_ref[...]
    h2 = jnp.where(h2 >= 0, h2, 0.2 * h2)

    # FC3 + softmax over the class axis (un-padded, lane width = num_classes).
    logits = jnp.dot(h2, w3_ref[...], preferred_element_type=jnp.float32) + b3_ref[...]
    m = jnp.max(logits, axis=1, keepdims=True)
    e = jnp.exp(logits - m)
    denom = jnp.sum(e, axis=1, keepdims=True)
    # approx reciprocal (EUP slot): rows sum to 1 within ~1e-3; use an exact
    # divide instead if a consumer needs exactly normalized probabilities.
    o_ref[...] = (e * pl.reciprocal(denom, approx=True)).astype(o_ref.dtype)


def _choose_tile_b(batch, input_dim, num_classes, x_itemsize, requested):
    """Pick a batch tile: big enough to amortize per-step overhead, small
    enough that the double-buffered working set fits VMEM on every gen
    (v7x has only 64 MiB physical / 32 MiB scoped default)."""
    budget_bytes = 16 << 20  # x + out double buffers; leaves plenty of headroom
    per_row = 2 * input_dim * x_itemsize + 2 * num_classes * 4
    max_rows = max(8, (budget_bytes // max(per_row, 1)) // 8 * 8)
    tile = 8192 if requested is None else requested
    tile = min(tile, max_rows, _round_up(batch, 8))
    tile = max(8, tile // 8 * 8)
    return tile


def predictor_forward(x, params, *, tile_b=None, weight_dtype=None):
    """Run the Predictor forward pass.

    tile_b:       batch-tile size (multiple of 8).  None -> auto (up to 8192,
                  clamped by a VMEM budget).
    weight_dtype: optional narrow dtype (e.g. jnp.bfloat16) for the three
                  weight matrices only.  x is never cast here (that would add
                  a whole extra HBM pass to a memory-bound kernel); biases and
                  all accumulation stay f32.
    """
    w1, b1, w2, b2, w3, b3 = params
    batch, input_dim = x.shape
    h1_dim = w1.shape[1]
    h2_dim = w2.shape[1]
    num_classes = w3.shape[1]

    if weight_dtype is not None:
        w1 = w1.astype(weight_dtype)
        w2 = w2.astype(weight_dtype)
        w3 = w3.astype(weight_dtype)
    b1f = b1.astype(jnp.float32)
    b2f = b2.astype(jnp.float32)
    b3f = b3.astype(jnp.float32)

    # Batch tiling: pad batch to whole tiles (output-only slice afterwards,
    # and only when padding was actually needed — output rows are tiny).
    tile_b = _choose_tile_b(batch, input_dim, num_classes, x.dtype.itemsize, tile_b)
    batch_p = _round_up(batch, tile_b)
    if batch_p != batch:
        x = jnp.pad(x, ((0, batch_p - batch), (0, 0)))
    grid = (batch_p // tile_b,)

    x_bytes = x.dtype.itemsize
    w_bytes = w1.dtype.itemsize
    cost = pl.CostEstimate(
        flops=2 * batch_p * (input_dim * h1_dim + h1_dim * h2_dim
                             + h2_dim * num_classes),
        transcendentals=batch_p * (num_classes + 1),
        bytes_accessed=(batch_p * (input_dim * x_bytes + num_classes * 4)
                        + (w1.size + w2.size + w3.size) * w_bytes
                        + (b1f.size + b2f.size + b3f.size) * 4),
    )

    def resident(shape):
        # Parameters: same block every grid step -> loaded once, VMEM-resident.
        return pl.BlockSpec(shape, lambda i: (0, 0))

    out = pl.pallas_call(
        predictor_kernel,
        out_shape=jax.ShapeDtypeStruct((batch_p, num_classes), jnp.float32),
        grid=grid,
        in_specs=[
            pl.BlockSpec((tile_b, input_dim), lambda i: (i, 0)),  # x: streamed
            resident(w1.shape), resident(b1f.shape),
            resident(w2.shape), resident(b2f.shape),
            resident(w3.shape), resident(b3f.shape),
        ],
        out_specs=pl.BlockSpec((tile_b, num_classes), lambda i: (i, 0)),
        compiler_params=pltpu.CompilerParams(
            dimension_semantics=("parallel",),
            vmem_limit_bytes=32 * 1024 * 1024,
        ),
        cost_estimate=cost,
    )(x, w1, b1f, w2, b2f, w3, b3f)

    if batch_p != batch:
        out = out[:batch]
    return out


def init_params(key, input_dim, num_classes):
    """Deterministic synthetic params. Shapes mirror nn.Linear but stored (in, out)."""
    k1, k2, k3, k4, k5, k6 = jax.random.split(key, 6)

    def uniform(k, shape, fan_in):
        bound = 1.0 / jnp.sqrt(jnp.float32(fan_in))
        return jax.random.uniform(k, shape, jnp.float32, -bound, bound)

    w1 = uniform(k1, (input_dim, 15), input_dim)
    b1 = uniform(k2, (1, 15), input_dim)
    w2 = uniform(k3, (15, 10), 15)
    b2 = uniform(k4, (1, 10), 15)
    w3 = uniform(k5, (10, num_classes), 10)
    b3 = uniform(k6, (1, num_classes), 10)
    return (w1, b1, w2, b2, w3, b3)


if __name__ == "__main__":
    input_dim = 32
    num_classes = 4
    batch = 64

    key = jax.random.PRNGKey(0)
    kx, kp = jax.random.split(key)

    x = jax.random.normal(kx, (batch, input_dim), dtype=jnp.float32)
    params = init_params(kp, input_dim, num_classes)

    # Plain-JAX reference (f32, exact module math).
    w1, b1, w2, b2, w3, b3 = params

    def leaky(v):
        return jnp.where(v >= 0, v, 0.2 * v)

    ref = jax.nn.softmax(leaky(leaky(x @ w1 + b1) @ w2 + b2) @ w3 + b3, axis=1)

    # Auto tile (single grid step at this small batch).
    out = jax.block_until_ready(predictor_forward(x, params))
    assert out.shape == (batch, num_classes)
    assert jnp.allclose(out, ref, atol=3e-3, rtol=0)
    assert jnp.allclose(jnp.sum(out, axis=1), 1.0, atol=5e-3)

    # Small tile so the batch grid has >1 step (exercises the pipeline path).
    out_tiled = jax.block_until_ready(predictor_forward(x, params, tile_b=16))
    assert out_tiled.shape == (batch, num_classes)
    assert jnp.allclose(out_tiled, ref, atol=3e-3, rtol=0)

    # bf16 weight path (weights only; x stays f32, accumulation stays f32).
    out_bf16 = jax.block_until_ready(
        predictor_forward(x, params, tile_b=16, weight_dtype=jnp.bfloat16))
    assert out_bf16.shape == (batch, num_classes)
    assert jnp.allclose(out_bf16, ref, atol=3e-2, rtol=0)
    assert jnp.allclose(jnp.sum(out_bf16, axis=1), 1.0, atol=2e-2)

    print("KERNEL_OK")
</pallas_src>

<mosaic_0001>
module attributes {stable_mosaic.version = 11 : i64} {
  func.func @predictor_kernel(%arg0: i32, %arg1: memref<64x32xf32, #tpu.memory_space<vmem>>, %arg2: memref<32x15xf32, #tpu.memory_space<vmem>>, %arg3: memref<1x15xf32, #tpu.memory_space<vmem>>, %arg4: memref<15x10xf32, #tpu.memory_space<vmem>>, %arg5: memref<1x10xf32, #tpu.memory_space<vmem>>, %arg6: memref<10x4xf32, #tpu.memory_space<vmem>>, %arg7: memref<1x4xf32, #tpu.memory_space<vmem>>, %arg8: memref<64x4xf32, #tpu.memory_space<vmem>>) attributes {dimension_semantics = [#tpu.dimension_semantics<parallel>], iteration_bounds = array<i64: 1>, scalar_prefetch = 0 : i64, scratch_operands = 0 : i64, tpu.core_type = #tpu.core_type<tc>, window_params = [{transform_indices = @transform_0, window_bounds = array<i64: 64, 32>}, {pipeline_mode = #tpu.pipeline_mode<synchronous>, transform_indices = @transform_1, window_bounds = array<i64: 32, 15>}, {pipeline_mode = #tpu.pipeline_mode<synchronous>, transform_indices = @transform_2, window_bounds = array<i64: 1, 15>}, {pipeline_mode = #tpu.pipeline_mode<synchronous>, transform_indices = @transform_3, window_bounds = array<i64: 15, 10>}, {pipeline_mode = #tpu.pipeline_mode<synchronous>, transform_indices = @transform_4, window_bounds = array<i64: 1, 10>}, {pipeline_mode = #tpu.pipeline_mode<synchronous>, transform_indices = @transform_5, window_bounds = array<i64: 10, 4>}, {pipeline_mode = #tpu.pipeline_mode<synchronous>, transform_indices = @transform_6, window_bounds = array<i64: 1, 4>}, {transform_indices = @transform_7, window_bounds = array<i64: 64, 4>}]} {
    %c0 = arith.constant 0 : index
    %c0_0 = arith.constant 0 : index
    %0 = vector.load %arg1[%c0, %c0_0] : memref<64x32xf32, #tpu.memory_space<vmem>>, vector<64x32xf32>
    %c0_1 = arith.constant 0 : index
    %c0_2 = arith.constant 0 : index
    %1 = vector.load %arg2[%c0_1, %c0_2] : memref<32x15xf32, #tpu.memory_space<vmem>>, vector<32x15xf32>
    %cst = arith.constant dense<0.000000e+00> : vector<64x15xf32>
    %2 = tpu.matmul %0, %1, %cst {dimension_numbers = #tpu.dot_dimension_numbers<[1], [0], [0], [1], [0, 0, 1, 1], [], []>} : vector<64x32xf32>, vector<32x15xf32>, vector<64x15xf32> -> vector<64x15xf32>
    %c0_3 = arith.constant 0 : index
    %c0_4 = arith.constant 0 : index
    %3 = vector.load %arg3[%c0_3, %c0_4] : memref<1x15xf32, #tpu.memory_space<vmem>>, vector<1x15xf32>
    %4 = vector.broadcast %3 : vector<1x15xf32> to vector<64x15xf32>
    %5 = arith.addf %2, %4 : vector<64x15xf32>
    %cst_5 = arith.constant 0.000000e+00 : f32
    %6 = vector.broadcast %cst_5 : f32 to vector<64x15xf32>
    %7 = arith.cmpf oge, %5, %6 : vector<64x15xf32>
    %cst_6 = arith.constant 2.000000e-01 : f32
    %8 = vector.broadcast %cst_6 : f32 to vector<64x15xf32>
    %9 = arith.mulf %8, %5 : vector<64x15xf32>
    %10 = arith.select %7, %5, %9 : vector<64x15xi1>, vector<64x15xf32>
    %c0_7 = arith.constant 0 : index
    %c0_8 = arith.constant 0 : index
    %11 = vector.load %arg4[%c0_7, %c0_8] : memref<15x10xf32, #tpu.memory_space<vmem>>, vector<15x10xf32>
    %cst_9 = arith.constant dense<0.000000e+00> : vector<64x10xf32>
    %12 = tpu.matmul %10, %11, %cst_9 {dimension_numbers = #tpu.dot_dimension_numbers<[1], [0], [0], [1], [0, 0, 1, 1], [], []>} : vector<64x15xf32>, vector<15x10xf32>, vector<64x10xf32> -> vector<64x10xf32>
    %c0_10 = arith.constant 0 : index
    %c0_11 = arith.constant 0 : index
    %13 = vector.load %arg5[%c0_10, %c0_11] : memref<1x10xf32, #tpu.memory_space<vmem>>, vector<1x10xf32>
    %14 = vector.broadcast %13 : vector<1x10xf32> to vector<64x10xf32>
    %15 = arith.addf %12, %14 : vector<64x10xf32>
    %cst_12 = arith.constant 0.000000e+00 : f32
    %16 = vector.broadcast %cst_12 : f32 to vector<64x10xf32>
    %17 = arith.cmpf oge, %15, %16 : vector<64x10xf32>
    %cst_13 = arith.constant 2.000000e-01 : f32
    %18 = vector.broadcast %cst_13 : f32 to vector<64x10xf32>
    %19 = arith.mulf %18, %15 : vector<64x10xf32>
    %20 = arith.select %17, %15, %19 : vector<64x10xi1>, vector<64x10xf32>
    %c0_14 = arith.constant 0 : index
    %c0_15 = arith.constant 0 : index
    %21 = vector.load %arg6[%c0_14, %c0_15] : memref<10x4xf32, #tpu.memory_space<vmem>>, vector<10x4xf32>
    %cst_16 = arith.constant dense<0.000000e+00> : vector<64x4xf32>
    %22 = tpu.matmul %20, %21, %cst_16 {dimension_numbers = #tpu.dot_dimension_numbers<[1], [0], [0], [1], [0, 0, 1, 1], [], []>} : vector<64x10xf32>, vector<10x4xf32>, vector<64x4xf32> -> vector<64x4xf32>
    %c0_17 = arith.constant 0 : index
    %c0_18 = arith.constant 0 : index
    %23 = vector.load %arg7[%c0_17, %c0_18] : memref<1x4xf32, #tpu.memory_space<vmem>>, vector<1x4xf32>
    %24 = vector.broadcast %23 : vector<1x4xf32> to vector<64x4xf32>
    %25 = arith.addf %22, %24 : vector<64x4xf32>
    %cst_19 = arith.constant dense<0xFF800000> : vector<64xf32>
    %26 = vector.multi_reduction <maximumf>, %25, %cst_19 [1] : vector<64x4xf32> to vector<64xf32>
    %27 = vector.shape_cast %26 : vector<64xf32> to vector<64x1xf32>
    %28 = vector.broadcast %27 : vector<64x1xf32> to vector<64x4xf32>
    %29 = arith.subf %25, %28 : vector<64x4xf32>
    %30 = math.exp %29 : vector<64x4xf32>
    %cst_20 = arith.constant dense<0.000000e+00> : vector<64xf32>
    %31 = vector.multi_reduction <add>, %30, %cst_20 [1] : vector<64x4xf32> to vector<64xf32>
    %32 = vector.shape_cast %31 : vector<64xf32> to vector<64x1xf32>
    %33 = tpu.reciprocal %32 {approx = true} : vector<64x1xf32> -> vector<64x1xf32>
    %34 = vector.broadcast %33 : vector<64x1xf32> to vector<64x4xf32>
    %35 = arith.mulf %30, %34 : vector<64x4xf32>
    %c0_21 = arith.constant 0 : index
    %c0_22 = arith.constant 0 : index
    %36 = vector.load %arg8[%c0_21, %c0_22] : memref<64x4xf32, #tpu.memory_space<vmem>>, vector<64x4xf32>
    tpu.vector_store %arg8[%c0_21, %c0_22], %35 {strides = array<i32>} : memref<64x4xf32, #tpu.memory_space<vmem>>, vector<64x4xf32>,
    return
  }
  func.func @transform_0(%arg0: i32) -> (i32, i32) {
    %c0_i32 = arith.constant 0 : i32
    %c0_i32_0 = arith.constant 0 : i32
    return %arg0, %c0_i32 : i32, i32
  }
  func.func @transform_1(%arg0: i32) -> (i32, i32) {
    %c0_i32 = arith.constant 0 : i32
    %c0_i32_0 = arith.constant 0 : i32
    %c0_i32_1 = arith.constant 0 : i32
    return %c0_i32, %c0_i32_0 : i32, i32
  }
  func.func @transform_2(%arg0: i32) -> (i32, i32) {
    %c0_i32 = arith.constant 0 : i32
    %c0_i32_0 = arith.constant 0 : i32
    %c0_i32_1 = arith.constant 0 : i32
    return %c0_i32, %c0_i32_0 : i32, i32
  }
  func.func @transform_3(%arg0: i32) -> (i32, i32) {
    %c0_i32 = arith.constant 0 : i32
    %c0_i32_0 = arith.constant 0 : i32
    %c0_i32_1 = arith.constant 0 : i32
    return %c0_i32, %c0_i32_0 : i32, i32
  }
  func.func @transform_4(%arg0: i32) -> (i32, i32) {
    %c0_i32 = arith.constant 0 : i32
    %c0_i32_0 = arith.constant 0 : i32
    %c0_i32_1 = arith.constant 0 : i32
    return %c0_i32, %c0_i32_0 : i32, i32
  }
  func.func @transform_5(%arg0: i32) -> (i32, i32) {
    %c0_i32 = arith.constant 0 : i32
    %c0_i32_0 = arith.constant 0 : i32
    %c0_i32_1 = arith.constant 0 : i32
    return %c0_i32, %c0_i32_0 : i32, i32
  }
  func.func @transform_6(%arg0: i32) -> (i32, i32) {
    %c0_i32 = arith.constant 0 : i32
    %c0_i32_0 = arith.constant 0 : i32
    %c0_i32_1 = arith.constant 0 : i32
    return %c0_i32, %c0_i32_0 : i32, i32
  }
  func.func @transform_7(%arg0: i32) -> (i32, i32) {
    %c0_i32 = arith.constant 0 : i32
    %c0_i32_0 = arith.constant 0 : i32
    return %arg0, %c0_i32 : i32, i32
  }
}

</mosaic_0001>

<llo_original>
// kernel: tpu_custom_call.1
$region0: #{tpu_custom_call.1}
  #allocation0 [shape = 'u32[]', space=smem, size = 0x4, offset = 0x4, fixed_abs, tag = 'smem constant byte address 0x4 - core index']
  #allocation1 [shape = 'u32[144,128]{1,0:T(1,128)}', space=vmem, size = 0x12000, scoped, tag = 'internal scratch']
  %s0 = inlined_call_operand.vmem [shape: f32[64,32], index: 0, kind: input, shape index: {}]
  %s1 = inlined_call_operand.vmem [shape: f32[32,15], index: 1, kind: input, shape index: {}]
  %s2 = inlined_call_operand.vmem [shape: f32[1,15], index: 2, kind: input, shape index: {}]
  %s3 = inlined_call_operand.vmem [shape: f32[15,10], index: 3, kind: input, shape index: {}]
  %s4 = inlined_call_operand.vmem [shape: f32[1,10], index: 4, kind: input, shape index: {}]
  %s5 = inlined_call_operand.vmem [shape: f32[10,4], index: 5, kind: input, shape index: {}]
  %s6 = inlined_call_operand.vmem [shape: f32[1,4], index: 6, kind: input, shape index: {}]
  %s7 = inlined_call_operand.vmem [shape: f32[64,4], index: 7, kind: output, shape index: {}]
  %s8 = sld [smem:[#allocation0]]
  $region38: #{tpu_custom_call.1} parent=0
    _
  %s10 = ssub.s32 1, %s8
  %s11 = scalar_select 0, %s10, %s8
  // Predicated region
  $region2: #{tpu_custom_call.1} parent=0 // pred_check
    _
  $region3: #{tpu_custom_call.1} parent=0 // pred_check_branch
    %13 = sbr.rel (0) target = $region5
  $region4: #{tpu_custom_call.1} parent=0 // pred_region
    _
  $region5: #{tpu_custom_call.1} parent=0 // pred_fallthru
    _
  // Predicated region
  $region6: #{tpu_custom_call.1} parent=0 // pred_check
    _
  $region7: #{tpu_custom_call.1} parent=0 // pred_check_branch
    %15 = sbr.rel (0) target = $region9
  $region8: #{tpu_custom_call.1} parent=0 // pred_region
    _
  $region9: #{tpu_custom_call.1} parent=0 // pred_fallthru
    _
  // Predicated region
  $region10: #{tpu_custom_call.1} parent=0 // pred_check
    _
  $region11: #{tpu_custom_call.1} parent=0 // pred_check_branch
    %17 = sbr.rel (0) target = $region13
  $region12: #{tpu_custom_call.1} parent=0 // pred_region
    _
  $region13: #{tpu_custom_call.1} parent=0 // pred_fallthru
    _
  // Predicated region
  $region14: #{tpu_custom_call.1} parent=0 // pred_check
    _
  $region15: #{tpu_custom_call.1} parent=0 // pred_check_branch
    %19 = sbr.rel (0) target = $region17
  $region16: #{tpu_custom_call.1} parent=0 // pred_region
    _
  $region17: #{tpu_custom_call.1} parent=0 // pred_fallthru
    _
  // Predicated region
  $region18: #{tpu_custom_call.1} parent=0 // pred_check
    _
  $region19: #{tpu_custom_call.1} parent=0 // pred_check_branch
    %21 = sbr.rel (0) target = $region21
  $region20: #{tpu_custom_call.1} parent=0 // pred_region
    _
  $region21: #{tpu_custom_call.1} parent=0 // pred_fallthru
    _
  // Predicated region
  $region22: #{tpu_custom_call.1} parent=0 // pred_check
    _
  $region23: #{tpu_custom_call.1} parent=0 // pred_check_branch
    %23 = sbr.rel (0) target = $region25
  $region24: #{tpu_custom_call.1} parent=0 // pred_region
    _
  $region25: #{tpu_custom_call.1} parent=0 // pred_fallthru
    _
  // Predicated region
  $region26: #{tpu_custom_call.1} parent=0 // pred_check
    _
  $region27: #{tpu_custom_call.1} parent=0 // pred_check_branch
    %25 = sbr.rel (0) target = $region29
  $region28: #{tpu_custom_call.1} parent=0 // pred_region
    _
  $region29: #{tpu_custom_call.1} parent=0 // pred_fallthru
    _
  %v26 = vld [vmem:[%s0] sm:$0xff]
  %v27 = vld [vmem:[%s0 + $0x8] sm:$0xff]
  %v28 = vld [vmem:[%s0 + $0x10] sm:$0xff]
  %v29 = vld [vmem:[%s0 + $0x18] sm:$0xff]
  %v30 = vld [vmem:[%s0 + $0x20] sm:$0xff]
  %v31 = vld [vmem:[%s0 + $0x28] sm:$0xff]
  %v32 = vld [vmem:[%s0 + $0x30] sm:$0xff]
  %v33 = vld [vmem:[%s0 + $0x38] sm:$0xff]
  %v34 = vld [vmem:[%s1] sm:$0xff]
  %v35 = vld [vmem:[%s1 + $0x8] sm:$0xff]
  %v36 = vld [vmem:[%s1 + $0x10] sm:$0xff]
  %v37 = vld [vmem:[%s1 + $0x18] sm:$0xff]
  %v38 = vld [vmem:[%s2] sm:$0x1]
  %v40 = vlaneseq
  %v41 = vshrl.u32 %v40, 7
  %v42 = vsub.s32 0, %v41
  %v43 = vrot.slane %v38, %v42
  %vm45 = vcmask 261120
  %v47 = vsel %vm45, %v26, 0
  %v50 = vsel %vm45, %v27, 0
  %v53 = vsel %vm45, %v28, 0
  %v56 = vsel %vm45, %v29, 0
  %v59 = vsel %vm45, %v30, 0
  %v62 = vsel %vm45, %v31, 0
  %v65 = vsel %vm45, %v32, 0
  %v68 = vsel %vm45, %v33, 0
  %70 = vmatprep.subr.mxu0 0.0
  %71 = vmatpush1.msra.mxu0 %v34
  %72 = vmatprep.subr.mxu0 0.0
  %73 = vmatpush1.msra.mxu0 %v35
  %74 = vmatprep.subr.mxu0 0.0
  %75 = vmatpush1.msra.mxu0 %v36
  %76 = vmatprep.subr.mxu0 0.0
  %77 = vmatpush1.msra.mxu0 %v37
  %78 = vmatprep.subr.mxu0 0.0
  %79 = vmatpush1.msra.mxu0 0.0
  %80 = vmatprep.subr.mxu0 0.0
  %81 = vmatpush1.msra.mxu0 0.0
  %82 = vmatprep.subr.mxu0 0.0
  %83 = vmatpush1.msra.mxu0 0.0
  %84 = vmatprep.subr.mxu0 0.0
  %85 = vmatpush1.msra.mxu0 0.0
  %86 = vmatprep.subr.mxu0 0.0
  %87 = vmatpush1.msra.mxu0 0.0
  %88 = vmatprep.subr.mxu0 0.0
  %89 = vmatpush1.msra.mxu0 0.0
  %90 = vmatprep.subr.mxu0 0.0
  %91 = vmatpush1.msra.mxu0 0.0
  %92 = vmatprep.subr.mxu0 0.0
  %93 = vmatpush1.msra.mxu0 0.0
  %94 = vmatprep.subr.mxu0 0.0
  %95 = vmatpush1.msra.mxu0 0.0
  %96 = vmatprep.subr.mxu0 0.0
  %97 = vmatpush1.msra.mxu0 0.0
  %98 = vmatprep.subr.mxu0 0.0
  %99 = vmatpush1.msra.mxu0 0.0
  %100 = vmatprep.subr.mxu0 0.0
  %101 = vmatpush1.msra.mxu0 0.0
  %102 = vmatprep.subr.mxu0 0.0
  %103 = vmatpush1.msra.mxu0 0.0
  %104 = vmatprep.subr.mxu0 0.0
  %105 = vmatpush1.msra.mxu0 0.0
  %106 = vmatprep.subr.mxu0 0.0
  %107 = vmatpush1.msra.mxu0 0.0
  %108 = vmatprep.subr.mxu0 0.0
  %109 = vmatpush1.msra.mxu0 0.0
  %110 = vmatprep.subr.mxu0 0.0
  %111 = vmatpush1.msra.mxu0 0.0
  %112 = vmatprep.subr.mxu0 0.0
  %113 = vmatpush1.msra.mxu0 0.0
  %114 = vmatprep.subr.mxu0 0.0
  %115 = vmatpush1.msra.mxu0 0.0
  %116 = vmatprep.subr.mxu0 0.0
  %117 = vmatpush1.msra.mxu0 0.0
  %118 = vmatprep.subr.mxu0 0.0
  %119 = vmatpush1.msra.mxu0 0.0
  %120 = vmatprep.subr.mxu0 0.0
  %121 = vmatpush1.msra.mxu0 0.0
  %122 = vmatprep.subr.mxu0 0.0
  %123 = vmatpush1.msra.mxu0 0.0
  %124 = vmatprep.subr.mxu0 0.0
  %125 = vmatpush1.msra.mxu0 0.0
  %126 = vmatprep.subr.mxu0 0.0
  %127 = vmatpush1.msra.mxu0 0.0
  %128 = vmatprep.subr.mxu0 0.0
  %129 = vmatpush1.msra.mxu0 0.0
  %130 = vmatprep.subr.mxu0 0.0
  %131 = vmatpush1.msra.mxu0 0.0
  %132 = vmatprep.subr.mxu0 0.0
  %133 = vmatpush1.msra.mxu0 0.0
  %134 = vmatprep.mubr.f32.mxu0 0.0
  %135 = vmatmul.mubr.f32.gmra.mrb[0].mxu0 %v47
  %v136 = vpop.f32.mrb[0].mxu0
  %v137 = vadd.f32 %v43, %v136
  %v138 = vpop.f32.mrb[0].mxu0
  %139 = vmatprep.mubr.f32.mxu0 0.0
  %140 = vmatmul.mubr.f32.gmra.mrb[0].mxu0 %v50
  %v141 = vpop.f32.mrb[0].mxu0
  %v142 = vadd.f32 %v43, %v141
  %v143 = vpop.f32.mrb[0].mxu0
  %144 = vmatprep.mubr.f32.mxu0 0.0
  %145 = vmatmul.mubr.f32.gmra.mrb[0].mxu0 %v53
  %v146 = vpop.f32.mrb[0].mxu0
  %v147 = vadd.f32 %v43, %v146
  %v148 = vpop.f32.mrb[0].mxu0
  %149 = vmatprep.mubr.f32.mxu0 0.0
  %150 = vmatmul.mubr.f32.gmra.mrb[0].mxu0 %v56
  %v151 = vpop.f32.mrb[0].mxu0
  %v152 = vadd.f32 %v43, %v151
  %v153 = vpop.f32.mrb[0].mxu0
  %154 = vmatprep.mubr.f32.mxu0 0.0
  %155 = vmatmul.mubr.f32.gmra.mrb[0].mxu0 %v59
  %v156 = vpop.f32.mrb[0].mxu0
  %v157 = vadd.f32 %v43, %v156
  %v158 = vpop.f32.mrb[0].mxu0
  %159 = vmatprep.mubr.f32.mxu0 0.0
  %160 = vmatmul.mubr.f32.gmra.mrb[0].mxu0 %v62
  %v161 = vpop.f32.mrb[0].mxu0
  %v162 = vadd.f32 %v43, %v161
  %v163 = vpop.f32.mrb[0].mxu0
  %164 = vmatprep.mubr.f32.mxu0 0.0
  %165 = vmatmul.mubr.f32.gmra.mrb[0].mxu0 %v65
  %v166 = vpop.f32.mrb[0].mxu0
  %v167 = vadd.f32 %v43, %v166
  %v168 = vpop.f32.mrb[0].mxu0
  %169 = vmatprep.mubr.f32.mxu0 0.0
  %170 = vmatmul.mubr.f32.gmra.mrb[0].mxu0 %v68
  %v171 = vpop.f32.mrb[0].mxu0
  %v172 = vadd.f32 %v43, %v171
  %v173 = vpop.f32.mrb[0].mxu0
  %174 = vdwg.mxu0
  %vm175 = vcmp.ge.f32.partialorder %v137, 0.0
  %vm176 = vcmp.ge.f32.partialorder %v142, 0.0
  %vm177 = vcmp.ge.f32.partialorder %v147, 0.0
  %vm178 = vcmp.ge.f32.partialorder %v152, 0.0
  %vm179 = vcmp.ge.f32.partialorder %v157, 0.0
  %vm180 = vcmp.ge.f32.partialorder %v162, 0.0
  %vm181 = vcmp.ge.f32.partialorder %v167, 0.0
  %vm182 = vcmp.ge.f32.partialorder %v172, 0.0
  %v183 = vmul.f32 %v137, 0.2
  %v184 = vmul.f32 %v142, 0.2
  %v185 = vmul.f32 %v147, 0.2
  %v186 = vmul.f32 %v152, 0.2
  %v187 = vmul.f32 %v157, 0.2
  %v188 = vmul.f32 %v162, 0.2
  %v189 = vmul.f32 %v167, 0.2
  %v190 = vmul.f32 %v172, 0.2
  %v191 = vsel %vm175, %v137, %v183
  %v192 = vsel %vm176, %v142, %v184
  %v193 = vsel %vm177, %v147, %v185
  %v194 = vsel %vm178, %v152, %v186
  %v195 = vsel %vm179, %v157, %v187
  %v196 = vsel %vm180, %v162, %v188
  %v197 = vsel %vm181, %v167, %v189
  %v198 = vsel %vm182, %v172, %v190
  %v199 = vld [vmem:[%s3] sm:$0xff]
  %v200 = vld [vmem:[%s3 + $0x8] sm:$0x7f]
  %v201 = vld [vmem:[%s4] sm:$0x1]
  %v203 = vlaneseq
  %v204 = vshrl.u32 %v203, 7
  %v205 = vsub.s32 0, %v204
  %v206 = vrot.slane %v201, %v205
  %vm208 = vcmask 121856
  %v210 = vsel %vm208, %v191, 0
  %v213 = vsel %vm208, %v192, 0
  %v216 = vsel %vm208, %v193, 0
  %v219 = vsel %vm208, %v194, 0
  %v222 = vsel %vm208, %v195, 0
  %v225 = vsel %vm208, %v196, 0
  %v228 = vsel %vm208, %v197, 0
  %v231 = vsel %vm208, %v198, 0
  %vm233 = vcmask 1046528
  %v235 = vsel %vm233, %v200, 0
  %237 = vmatprep.subr.mxu0 0.0
  %238 = vmatpush1.msra.mxu0 %v199
  %239 = vmatprep.subr.mxu0 0.0
  %240 = vmatpush1.msra.mxu0 %v235
  %241 = vmatprep.subr.mxu0 0.0
  %242 = vmatpush1.msra.mxu0 0.0
  %243 = vmatprep.subr.mxu0 0.0
  %244 = vmatpush1.msra.mxu0 0.0
  %245 = vmatprep.subr.mxu0 0.0
  %246 = vmatpush1.msra.mxu0 0.0
  %247 = vmatprep.subr.mxu0 0.0
  %248 = vmatpush1.msra.mxu0 0.0
  %249 = vmatprep.subr.mxu0 0.0
  %250 = vmatpush1.msra.mxu0 0.0
  %251 = vmatprep.subr.mxu0 0.0
  %252 = vmatpush1.msra.mxu0 0.0
  %253 = vmatprep.subr.mxu0 0.0
  %254 = vmatpush1.msra.mxu0 0.0
  %255 = vmatprep.subr.mxu0 0.0
  %256 = vmatpush1.msra.mxu0 0.0
  %257 = vmatprep.subr.mxu0 0.0
  %258 = vmatpush1.msra.mxu0 0.0
  %259 = vmatprep.subr.mxu0 0.0
  %260 = vmatpush1.msra.mxu0 0.0
  %261 = vmatprep.subr.mxu0 0.0
  %262 = vmatpush1.msra.mxu0 0.0
  %263 = vmatprep.subr.mxu0 0.0
  %264 = vmatpush1.msra.mxu0 0.0
  %265 = vmatprep.subr.mxu0 0.0
  %266 = vmatpush1.msra.mxu0 0.0
  %267 = vmatprep.subr.mxu0 0.0
  %268 = vmatpush1.msra.mxu0 0.0
  %269 = vmatprep.subr.mxu0 0.0
  %270 = vmatpush1.msra.mxu0 0.0
  %271 = vmatprep.subr.mxu0 0.0
  %272 = vmatpush1.msra.mxu0 0.0
  %273 = vmatprep.subr.mxu0 0.0
  %274 = vmatpush1.msra.mxu0 0.0
  %275 = vmatprep.subr.mxu0 0.0
  %276 = vmatpush1.msra.mxu0 0.0
  %277 = vmatprep.subr.mxu0 0.0
  %278 = vmatpush1.msra.mxu0 0.0
  %279 = vmatprep.subr.mxu0 0.0
  %280 = vmatpush1.msra.mxu0 0.0
  %281 = vmatprep.subr.mxu0 0.0
  %282 = vmatpush1.msra.mxu0 0.0
  %283 = vmatprep.subr.mxu0 0.0
  %284 = vmatpush1.msra.mxu0 0.0
  %285 = vmatprep.subr.mxu0 0.0
  %286 = vmatpush1.msra.mxu0 0.0
  %287 = vmatprep.subr.mxu0 0.0
  %288 = vmatpush1.msra.mxu0 0.0
  %289 = vmatprep.subr.mxu0 0.0
  %290 = vmatpush1.msra.mxu0 0.0
  %291 = vmatprep.subr.mxu0 0.0
  %292 = vmatpush1.msra.mxu0 0.0
  %293 = vmatprep.subr.mxu0 0.0
  %294 = vmatpush1.msra.mxu0 0.0
  %295 = vmatprep.subr.mxu0 0.0
  %296 = vmatpush1.msra.mxu0 0.0
  %297 = vmatprep.subr.mxu0 0.0
  %298 = vmatpush1.msra.mxu0 0.0
  %299 = vmatprep.subr.mxu0 0.0
  %300 = vmatpush1.msra.mxu0 0.0
  %301 = vmatprep.mubr.f32.mxu0 0.0
  %302 = vmatmul.mubr.f32.gmra.mrb[0].mxu0 %v210
  %v303 = vpop.f32.mrb[0].mxu0
  %v304 = vadd.f32 %v206, %v303
  %v305 = vpop.f32.mrb[0].mxu0
  %306 = vmatprep.mubr.f32.mxu0 0.0
  %307 = vmatmul.mubr.f32.gmra.mrb[0].mxu0 %v213
  %v308 = vpop.f32.mrb[0].mxu0
  %v309 = vadd.f32 %v206, %v308
  %v310 = vpop.f32.mrb[0].mxu0
  %311 = vmatprep.mubr.f32.mxu0 0.0
  %312 = vmatmul.mubr.f32.gmra.mrb[0].mxu0 %v216
  %v313 = vpop.f32.mrb[0].mxu0
  %v314 = vadd.f32 %v206, %v313
  %v315 = vpop.f32.mrb[0].mxu0
  %316 = vmatprep.mubr.f32.mxu0 0.0
  %317 = vmatmul.mubr.f32.gmra.mrb[0].mxu0 %v219
  %v318 = vpop.f32.mrb[0].mxu0
  %v319 = vadd.f32 %v206, %v318
  %v320 = vpop.f32.mrb[0].mxu0
  %321 = vmatprep.mubr.f32.mxu0 0.0
  %322 = vmatmul.mubr.f32.gmra.mrb[0].mxu0 %v222
  %v323 = vpop.f32.mrb[0].mxu0
  %v324 = vadd.f32 %v206, %v323
  %v325 = vpop.f32.mrb[0].mxu0
  %326 = vmatprep.mubr.f32.mxu0 0.0
  %327 = vmatmul.mubr.f32.gmra.mrb[0].mxu0 %v225
  %v328 = vpop.f32.mrb[0].mxu0
  %v329 = vadd.f32 %v206, %v328
  %v330 = vpop.f32.mrb[0].mxu0
  %331 = vmatprep.mubr.f32.mxu0 0.0
  %332 = vmatmul.mubr.f32.gmra.mrb[0].mxu0 %v228
  %v333 = vpop.f32.mrb[0].mxu0
  %v334 = vadd.f32 %v206, %v333
  %v335 = vpop.f32.mrb[0].mxu0
  %336 = vmatprep.mubr.f32.mxu0 0.0
  %337 = vmatmul.mubr.f32.gmra.mrb[0].mxu0 %v231
  %v338 = vpop.f32.mrb[0].mxu0
  %v339 = vadd.f32 %v206, %v338
  %v340 = vpop.f32.mrb[0].mxu0
  %341 = vdwg.mxu0
  %vm342 = vcmp.ge.f32.partialorder %v304, 0.0
  %vm343 = vcmp.ge.f32.partialorder %v309, 0.0
  %vm344 = vcmp.ge.f32.partialorder %v314, 0.0
  %vm345 = vcmp.ge.f32.partialorder %v319, 0.0
  %vm346 = vcmp.ge.f32.partialorder %v324, 0.0
  %vm347 = vcmp.ge.f32.partialorder %v329, 0.0
  %vm348 = vcmp.ge.f32.partialorder %v334, 0.0
  %vm349 = vcmp.ge.f32.partialorder %v339, 0.0
  %v350 = vmul.f32 %v304, 0.2
  %v351 = vmul.f32 %v309, 0.2
  %v352 = vmul.f32 %v314, 0.2
  %v353 = vmul.f32 %v319, 0.2
  %v354 = vmul.f32 %v324, 0.2
  %v355 = vmul.f32 %v329, 0.2
  %v356 = vmul.f32 %v334, 0.2
  %v357 = vmul.f32 %v339, 0.2
  %v358 = vsel %vm342, %v304, %v350
  %v359 = vsel %vm343, %v309, %v351
  %v360 = vsel %vm344, %v314, %v352
  %v361 = vsel %vm345, %v319, %v353
  %v362 = vsel %vm346, %v324, %v354
  %v363 = vsel %vm347, %v329, %v355
  %v364 = vsel %vm348, %v334, %v356
  %v365 = vsel %vm349, %v339, %v357
  %v366 = vld [vmem:[%s5] sm:$0xff]
  %v367 = vld [vmem:[%s5 + $0x8] sm:$0x3]
  %v368 = vld [vmem:[%s6] sm:$0x1]
  %v370 = vlaneseq
  %v371 = vshrl.u32 %v370, 7
  %v372 = vsub.s32 0, %v371
  %v373 = vrot.slane %v368, %v372
  %vm375 = vcmask 80896
  %v377 = vsel %vm375, %v358, 0
  %v380 = vsel %vm375, %v359, 0
  %v383 = vsel %vm375, %v360, 0
  %v386 = vsel %vm375, %v361, 0
  %v389 = vsel %vm375, %v362, 0
  %v392 = vsel %vm375, %v363, 0
  %v395 = vsel %vm375, %v364, 0
  %v398 = vsel %vm375, %v365, 0
  %vm400 = vcmask 1041408
  %v402 = vsel %vm400, %v367, 0
  %404 = vmatprep.subr.mxu0 0.0
  %405 = vmatpush1.msra.mxu0 %v366
  %406 = vmatprep.subr.mxu0 0.0
  %407 = vmatpush1.msra.mxu0 %v402
  %408 = vmatprep.subr.mxu0 0.0
  %409 = vmatpush1.msra.mxu0 0.0
  %410 = vmatprep.subr.mxu0 0.0
  %411 = vmatpush1.msra.mxu0 0.0
  %412 = vmatprep.subr.mxu0 0.0
  %413 = vmatpush1.msra.mxu0 0.0
  %414 = vmatprep.subr.mxu0 0.0
  %415 = vmatpush1.msra.mxu0 0.0
  %416 = vmatprep.subr.mxu0 0.0
  %417 = vmatpush1.msra.mxu0 0.0
  %418 = vmatprep.subr.mxu0 0.0
  %419 = vmatpush1.msra.mxu0 0.0
  %420 = vmatprep.subr.mxu0 0.0
  %421 = vmatpush1.msra.mxu0 0.0
  %422 = vmatprep.subr.mxu0 0.0
  %423 = vmatpush1.msra.mxu0 0.0
  %424 = vmatprep.subr.mxu0 0.0
  %425 = vmatpush1.msra.mxu0 0.0
  %426 = vmatprep.subr.mxu0 0.0
  %427 = vmatpush1.msra.mxu0 0.0
  %428 = vmatprep.subr.mxu0 0.0
  %429 = vmatpush1.msra.mxu0 0.0
  %430 = vmatprep.subr.mxu0 0.0
  %431 = vmatpush1.msra.mxu0 0.0
  %432 = vmatprep.subr.mxu0 0.0
  %433 = vmatpush1.msra.mxu0 0.0
  %434 = vmatprep.subr.mxu0 0.0
  %435 = vmatpush1.msra.mxu0 0.0
  %436 = vmatprep.subr.mxu0 0.0
  %437 = vmatpush1.msra.mxu0 0.0
  %438 = vmatprep.subr.mxu0 0.0
  %439 = vmatpush1.msra.mxu0 0.0
  %440 = vmatprep.subr.mxu0 0.0
  %441 = vmatpush1.msra.mxu0 0.0
  %442 = vmatprep.subr.mxu0 0.0
  %443 = vmatpush1.msra.mxu0 0.0
  %444 = vmatprep.subr.mxu0 0.0
  %445 = vmatpush1.msra.mxu0 0.0
  %446 = vmatprep.subr.mxu0 0.0
  %447 = vmatpush1.msra.mxu0 0.0
  %448 = vmatprep.subr.mxu0 0.0
  %449 = vmatpush1.msra.mxu0 0.0
  %450 = vmatprep.subr.mxu0 0.0
  %451 = vmatpush1.msra.mxu0 0.0
  %452 = vmatprep.subr.mxu0 0.0
  %453 = vmatpush1.msra.mxu0 0.0
  %454 = vmatprep.subr.mxu0 0.0
  %455 = vmatpush1.msra.mxu0 0.0
  %456 = vmatprep.subr.mxu0 0.0
  %457 = vmatpush1.msra.mxu0 0.0
  %458 = vmatprep.subr.mxu0 0.0
  %459 = vmatpush1.msra.mxu0 0.0
  %460 = vmatprep.subr.mxu0 0.0
  %461 = vmatpush1.msra.mxu0 0.0
  %462 = vmatprep.subr.mxu0 0.0
  %463 = vmatpush1.msra.mxu0 0.0
  %464 = vmatprep.subr.mxu0 0.0
  %465 = vmatpush1.msra.mxu0 0.0
  %466 = vmatprep.subr.mxu0 0.0
  %467 = vmatpush1.msra.mxu0 0.0
  %468 = vmatprep.mubr.f32.mxu0 0.0
  %469 = vmatmul.mubr.f32.gmra.mrb[0].mxu0 %v377
  %v470 = vpop.f32.mrb[0].mxu0
  %v471 = vadd.f32 %v373, %v470
  %v472 = vpop.f32.mrb[0].mxu0
  %473 = vmatprep.mubr.f32.mxu0 0.0
  %474 = vmatmul.mubr.f32.gmra.mrb[0].mxu0 %v380
  %v475 = vpop.f32.mrb[0].mxu0
  %v476 = vadd.f32 %v373, %v475
  %v477 = vpop.f32.mrb[0].mxu0
  %478 = vmatprep.mubr.f32.mxu0 0.0
  %479 = vmatmul.mubr.f32.gmra.mrb[0].mxu0 %v383
  %v480 = vpop.f32.mrb[0].mxu0
  %v481 = vadd.f32 %v373, %v480
  %v482 = vpop.f32.mrb[0].mxu0
  %483 = vmatprep.mubr.f32.mxu0 0.0
  %484 = vmatmul.mubr.f32.gmra.mrb[0].mxu0 %v386
  %v485 = vpop.f32.mrb[0].mxu0
  %v486 = vadd.f32 %v373, %v485
  %v487 = vpop.f32.mrb[0].mxu0
  %488 = vmatprep.mubr.f32.mxu0 0.0
  %489 = vmatmul.mubr.f32.gmra.mrb[0].mxu0 %v389
  %v490 = vpop.f32.mrb[0].mxu0
  %v491 = vadd.f32 %v373, %v490
  %v492 = vpop.f32.mrb[0].mxu0
  %493 = vmatprep.mubr.f32.mxu0 0.0
  %494 = vmatmul.mubr.f32.gmra.mrb[0].mxu0 %v392
  %v495 = vpop.f32.mrb[0].mxu0
  %v496 = vadd.f32 %v373, %v495
  %v497 = vpop.f32.mrb[0].mxu0
  %498 = vmatprep.mubr.f32.mxu0 0.0
  %499 = vmatmul.mubr.f32.gmra.mrb[0].mxu0 %v395
  %v500 = vpop.f32.mrb[0].mxu0
  %v501 = vadd.f32 %v373, %v500
  %v502 = vpop.f32.mrb[0].mxu0
  %503 = vmatprep.mubr.f32.mxu0 0.0
  %504 = vmatmul.mubr.f32.gmra.mrb[0].mxu0 %v398
  %v505 = vpop.f32.mrb[0].mxu0
  %v506 = vadd.f32 %v373, %v505
  %v507 = vpop.f32.mrb[0].mxu0
  %508 = vdwg.mxu0
  %vm509 = vcmask 31744
  %v510 = vsel %vm509, %v471, -inf
  %511 = vmax.xlane.f32.xlu0 %v510
  %v512 = vpop.xlane.xlu0 %511
  %v513 = vsel %vm509, %v476, -inf
  %514 = vmax.xlane.f32.xlu0 %v513
  %v515 = vpop.xlane.xlu0 %514
  %v516 = vsel %vm509, %v481, -inf
  %517 = vmax.xlane.f32.xlu0 %v516
  %v518 = vpop.xlane.xlu0 %517
  %v519 = vsel %vm509, %v486, -inf
  %520 = vmax.xlane.f32.xlu0 %v519
  %v521 = vpop.xlane.xlu0 %520
  %v522 = vsel %vm509, %v491, -inf
  %523 = vmax.xlane.f32.xlu0 %v522
  %v524 = vpop.xlane.xlu0 %523
  %v525 = vsel %vm509, %v496, -inf
  %526 = vmax.xlane.f32.xlu0 %v525
  %v527 = vpop.xlane.xlu0 %526
  %v528 = vsel %vm509, %v501, -inf
  %529 = vmax.xlane.f32.xlu0 %v528
  %v530 = vpop.xlane.xlu0 %529
  %v531 = vsel %vm509, %v506, -inf
  %532 = vmax.xlane.f32.xlu0 %v531
  %v533 = vpop.xlane.xlu0 %532
  %v534 = vsub.f32 %v471, %v512
  %v535 = vsub.f32 %v476, %v515
  %v536 = vsub.f32 %v481, %v518
  %v537 = vsub.f32 %v486, %v521
  %v538 = vsub.f32 %v491, %v524
  %v539 = vsub.f32 %v496, %v527
  %v540 = vsub.f32 %v501, %v530
  %v541 = vsub.f32 %v506, %v533
  %v542 = vmul.f32 %v534, 1.442695
  %v543 = vpow.pop %v542
  %v544 = vmul.f32 %v535, 1.442695
  %v545 = vpow.pop %v544
  %v546 = vmul.f32 %v536, 1.442695
  %v547 = vpow.pop %v546
  %v548 = vmul.f32 %v537, 1.442695
  %v549 = vpow.pop %v548
  %v550 = vmul.f32 %v538, 1.442695
  %v551 = vpow.pop %v550
  %v552 = vmul.f32 %v539, 1.442695
  %v553 = vpow.pop %v552
  %v554 = vmul.f32 %v540, 1.442695
  %v555 = vpow.pop %v554
  %v556 = vmul.f32 %v541, 1.442695
  %v557 = vpow.pop %v556
  %v558 = vsel %vm509, %v543, 0.0
  %559 = vadd.xlane.f32.xlu0 %v558
  %v560 = vpop.xlane.xlu0 %559
  %v561 = vsel %vm509, %v545, 0.0
  %562 = vadd.xlane.f32.xlu0 %v561
  %v563 = vpop.xlane.xlu0 %562
  %v564 = vsel %vm509, %v547, 0.0
  %565 = vadd.xlane.f32.xlu0 %v564
  %v566 = vpop.xlane.xlu0 %565
  %v567 = vsel %vm509, %v549, 0.0
  %568 = vadd.xlane.f32.xlu0 %v567
  %v569 = vpop.xlane.xlu0 %568
  %v570 = vsel %vm509, %v551, 0.0
  %571 = vadd.xlane.f32.xlu0 %v570
  %v572 = vpop.xlane.xlu0 %571
  %v573 = vsel %vm509, %v553, 0.0
  %574 = vadd.xlane.f32.xlu0 %v573
  %v575 = vpop.xlane.xlu0 %574
  %v576 = vsel %vm509, %v555, 0.0
  %577 = vadd.xlane.f32.xlu0 %v576
  %v578 = vpop.xlane.xlu0 %577
  %v579 = vsel %vm509, %v557, 0.0
  %580 = vadd.xlane.f32.xlu0 %v579
  %v581 = vpop.xlane.xlu0 %580
  %v582 = vrcp.pop %v560
  %v583 = vrcp.pop %v563
  %v584 = vrcp.pop %v566
  %v585 = vrcp.pop %v569
  %v586 = vrcp.pop %v572
  %v587 = vrcp.pop %v575
  %v588 = vrcp.pop %v578
  %v589 = vrcp.pop %v581
  %v590 = vmul.f32 %v543, %v582
  %v591 = vmul.f32 %v545, %v583
  %v592 = vmul.f32 %v547, %v584
  %v593 = vmul.f32 %v549, %v585
  %v594 = vmul.f32 %v551, %v586
  %v595 = vmul.f32 %v553, %v587
  %v596 = vmul.f32 %v555, %v588
  %v597 = vmul.f32 %v557, %v589
  %598 = vst.msk [vmem:[%s7] sm:$0xff] %vm509, %v590
  %599 = vst.msk [vmem:[%s7 + $0x8] sm:$0xff] %vm509, %v591
  %600 = vst.msk [vmem:[%s7 + $0x10] sm:$0xff] %vm509, %v592
  %601 = vst.msk [vmem:[%s7 + $0x18] sm:$0xff] %vm509, %v593
  %602 = vst.msk [vmem:[%s7 + $0x20] sm:$0xff] %vm509, %v594
  %603 = vst.msk [vmem:[%s7 + $0x28] sm:$0xff] %vm509, %v595
  %604 = vst.msk [vmem:[%s7 + $0x30] sm:$0xff] %vm509, %v596
  %605 = vst.msk [vmem:[%s7 + $0x38] sm:$0xff] %vm509, %v597
  // Predicated region
  $region30: #{tpu_custom_call.1} parent=0 // pred_check
    _
  $region31: #{tpu_custom_call.1} parent=0 // pred_check_branch
    %607 = sbr.rel (0) target = $region33
  $region32: #{tpu_custom_call.1} parent=0 // pred_region
    _
  $region33: #{tpu_custom_call.1} parent=0 // pred_fallthru
    _
  // Predicated region
  $region34: #{tpu_custom_call.1} parent=0 // pred_check
    _
  $region35: #{tpu_custom_call.1} parent=0 // pred_check_branch
    %609 = sbr.rel (0) target = $region37
  $region36: #{tpu_custom_call.1} parent=0 // pred_region
    _
  $region37: #{tpu_custom_call.1} parent=0 // pred_fallthru
    _

</llo_original>
